<compile_context>
chip_gen: v7x
topology: tpu7x:2x2x1
jax: 0.10.0
libtpu: 0.0.40
codegen_flags: <defaults>
</compile_context>

<pallas_src>
import jax
import jax.numpy as jnp
from jax.experimental import pallas as pl
from jax.experimental.pallas import tpu as pltpu


def generator_kernel(x_ref, w1_ref, b1_ref, w2_ref, b2_ref, w3_ref, b3_ref, o_ref):
    x = x_ref[...]                                             # (TILE_B, 10)

    # Layer 1: Linear(10 -> 128) + ReLU
    h1 = jnp.dot(x, w1_ref[...], preferred_element_type=jnp.float32) + b1_ref[...]
    h1 = jnp.maximum(h1, 0.0)

    # Layer 2: Linear(128 -> 256) + ReLU
    h2 = jnp.dot(h1, w2_ref[...], preferred_element_type=jnp.float32) + b2_ref[...]
    h2 = jnp.maximum(h2, 0.0)

    # Layer 3: Linear(256 -> 50) + Tanh
    h3 = jnp.dot(h2, w3_ref[...], preferred_element_type=jnp.float32) + b3_ref[...]
    o_ref[...] = jnp.tanh(h3)


def generator_forward(x, params, *, tile_b=256):
    """x: (B, input_dim) float32; params: dict of W/b arrays (W: (in, out), b: (1, out))."""
    w1, b1, w2, b2, w3, b3 = (params["w1"], params["b1"], params["w2"],
                              params["b2"], params["w3"], params["b3"])
    batch, in_dim = x.shape
    hid1 = w1.shape[1]
    hid2 = w2.shape[1]
    out_dim = w3.shape[1]

    # Batch tile: full batch if small, otherwise a multiple-of-8 tile.
    tb = batch if batch <= tile_b else tile_b
    grid = (pl.cdiv(batch, tb),)

    # Weights/biases: full-array blocks, constant block index -> stay resident
    # in VMEM across all grid steps (no re-DMA).
    def resident(a):
        return pl.BlockSpec(a.shape, lambda i, _nd=a.ndim: (0,) * _nd)

    flops = 2 * batch * (in_dim * hid1 + hid1 * hid2 + hid2 * out_dim)
    transcendentals = batch * out_dim  # tanh on the output
    weight_bytes = 4 * (in_dim * hid1 + hid1 + hid1 * hid2 + hid2
                        + hid2 * out_dim + out_dim)
    bytes_accessed = 4 * batch * (in_dim + out_dim) + weight_bytes

    return pl.pallas_call(
        generator_kernel,
        out_shape=jax.ShapeDtypeStruct((batch, out_dim), jnp.float32),
        grid=grid,
        in_specs=[
            pl.BlockSpec((tb, in_dim), lambda i: (i, 0)),   # x: streamed per tile
            resident(w1), resident(b1),
            resident(w2), resident(b2),
            resident(w3), resident(b3),
        ],
        out_specs=pl.BlockSpec((tb, out_dim), lambda i: (i, 0)),
        compiler_params=pltpu.CompilerParams(
            dimension_semantics=("parallel",),              # megacore sharding on v7x
        ),
        cost_estimate=pl.CostEstimate(
            flops=flops,
            transcendentals=transcendentals,
            bytes_accessed=bytes_accessed,
        ),
    )(x, w1, b1, w2, b2, w3, b3)


def init_generator_params(key, input_dim=10, output_dim=50):
    """Deterministic init matching PyTorch Linear's U(-1/sqrt(fan_in), +1/sqrt(fan_in))."""
    dims = [(input_dim, 128), (128, 256), (256, output_dim)]
    params = {}
    for i, (fan_in, fan_out) in enumerate(dims, start=1):
        key, kw, kb = jax.random.split(key, 3)
        bound = 1.0 / jnp.sqrt(float(fan_in))
        params[f"w{i}"] = jax.random.uniform(
            kw, (fan_in, fan_out), jnp.float32, minval=-bound, maxval=bound)
        params[f"b{i}"] = jax.random.uniform(
            kb, (1, fan_out), jnp.float32, minval=-bound, maxval=bound)
    return params


if __name__ == "__main__":
    key = jax.random.PRNGKey(0)
    key, kx_small, kx_big = jax.random.split(key, 3)

    input_dim, output_dim = 10, 50
    params = init_generator_params(key, input_dim, output_dim)

    # Pure-JAX reference for sanity checks.
    def ref(x, p):
        h = jnp.maximum(x @ p["w1"] + p["b1"], 0.0)
        h = jnp.maximum(h @ p["w2"] + p["b2"], 0.0)
        return jnp.tanh(h @ p["w3"] + p["b3"])

    # Small batch: single grid step, block = full batch.
    x_small = jax.random.normal(kx_small, (8, input_dim), dtype=jnp.float32)
    out_small = jax.block_until_ready(generator_forward(x_small, params))
    assert out_small.shape == (8, output_dim)
    assert jnp.allclose(out_small, ref(x_small, params), atol=1e-5, rtol=1e-5)

    # Larger batch: exercises the tiled, pipelined grid (2 steps of TILE_B=256).
    x_big = jax.random.normal(kx_big, (512, input_dim), dtype=jnp.float32)
    out_big = jax.block_until_ready(generator_forward(x_big, params))
    assert out_big.shape == (512, output_dim)
    assert jnp.allclose(out_big, ref(x_big, params), atol=1e-5, rtol=1e-5)

    print("KERNEL_OK")
</pallas_src>

<mosaic_0001>
module attributes {stable_mosaic.version = 11 : i64} {
  func.func @generator_kernel(%arg0: i32, %arg1: memref<8x10xf32, #tpu.memory_space<vmem>>, %arg2: memref<10x128xf32, #tpu.memory_space<vmem>>, %arg3: memref<1x128xf32, #tpu.memory_space<vmem>>, %arg4: memref<128x256xf32, #tpu.memory_space<vmem>>, %arg5: memref<1x256xf32, #tpu.memory_space<vmem>>, %arg6: memref<256x50xf32, #tpu.memory_space<vmem>>, %arg7: memref<1x50xf32, #tpu.memory_space<vmem>>, %arg8: memref<8x50xf32, #tpu.memory_space<vmem>>) attributes {dimension_semantics = [#tpu.dimension_semantics<parallel>], iteration_bounds = array<i64: 1>, scalar_prefetch = 0 : i64, scratch_operands = 0 : i64, tpu.core_type = #tpu.core_type<tc>, window_params = [{transform_indices = @transform_0, window_bounds = array<i64: 8, 10>}, {pipeline_mode = #tpu.pipeline_mode<synchronous>, transform_indices = @transform_1, window_bounds = array<i64: 10, 128>}, {pipeline_mode = #tpu.pipeline_mode<synchronous>, transform_indices = @transform_2, window_bounds = array<i64: 1, 128>}, {pipeline_mode = #tpu.pipeline_mode<synchronous>, transform_indices = @transform_3, window_bounds = array<i64: 128, 256>}, {pipeline_mode = #tpu.pipeline_mode<synchronous>, transform_indices = @transform_4, window_bounds = array<i64: 1, 256>}, {pipeline_mode = #tpu.pipeline_mode<synchronous>, transform_indices = @transform_5, window_bounds = array<i64: 256, 50>}, {pipeline_mode = #tpu.pipeline_mode<synchronous>, transform_indices = @transform_6, window_bounds = array<i64: 1, 50>}, {transform_indices = @transform_7, window_bounds = array<i64: 8, 50>}]} {
    %c0 = arith.constant 0 : index
    %c0_0 = arith.constant 0 : index
    %0 = vector.load %arg1[%c0, %c0_0] : memref<8x10xf32, #tpu.memory_space<vmem>>, vector<8x10xf32>
    %c0_1 = arith.constant 0 : index
    %c0_2 = arith.constant 0 : index
    %1 = vector.load %arg2[%c0_1, %c0_2] : memref<10x128xf32, #tpu.memory_space<vmem>>, vector<10x128xf32>
    %cst = arith.constant dense<0.000000e+00> : vector<8x128xf32>
    %2 = tpu.matmul %0, %1, %cst {dimension_numbers = #tpu.dot_dimension_numbers<[1], [0], [0], [1], [0, 0, 1, 1], [], []>} : vector<8x10xf32>, vector<10x128xf32>, vector<8x128xf32> -> vector<8x128xf32>
    %c0_3 = arith.constant 0 : index
    %c0_4 = arith.constant 0 : index
    %3 = vector.load %arg3[%c0_3, %c0_4] : memref<1x128xf32, #tpu.memory_space<vmem>>, vector<1x128xf32>
    %4 = vector.broadcast %3 : vector<1x128xf32> to vector<8x128xf32>
    %5 = arith.addf %2, %4 : vector<8x128xf32>
    %cst_5 = arith.constant 0.000000e+00 : f32
    %6 = vector.broadcast %cst_5 : f32 to vector<8x128xf32>
    %7 = arith.maximumf %5, %6 : vector<8x128xf32>
    %c0_6 = arith.constant 0 : index
    %c0_7 = arith.constant 0 : index
    %8 = vector.load %arg4[%c0_6, %c0_7] : memref<128x256xf32, #tpu.memory_space<vmem>>, vector<128x256xf32>
    %cst_8 = arith.constant dense<0.000000e+00> : vector<8x256xf32>
    %9 = tpu.matmul %7, %8, %cst_8 {dimension_numbers = #tpu.dot_dimension_numbers<[1], [0], [0], [1], [0, 0, 1, 1], [], []>} : vector<8x128xf32>, vector<128x256xf32>, vector<8x256xf32> -> vector<8x256xf32>
    %c0_9 = arith.constant 0 : index
    %c0_10 = arith.constant 0 : index
    %10 = vector.load %arg5[%c0_9, %c0_10] : memref<1x256xf32, #tpu.memory_space<vmem>>, vector<1x256xf32>
    %11 = vector.broadcast %10 : vector<1x256xf32> to vector<8x256xf32>
    %12 = arith.addf %9, %11 : vector<8x256xf32>
    %cst_11 = arith.constant 0.000000e+00 : f32
    %13 = vector.broadcast %cst_11 : f32 to vector<8x256xf32>
    %14 = arith.maximumf %12, %13 : vector<8x256xf32>
    %c0_12 = arith.constant 0 : index
    %c0_13 = arith.constant 0 : index
    %15 = vector.load %arg6[%c0_12, %c0_13] : memref<256x50xf32, #tpu.memory_space<vmem>>, vector<256x50xf32>
    %cst_14 = arith.constant dense<0.000000e+00> : vector<8x50xf32>
    %16 = tpu.matmul %14, %15, %cst_14 {dimension_numbers = #tpu.dot_dimension_numbers<[1], [0], [0], [1], [0, 0, 1, 1], [], []>} : vector<8x256xf32>, vector<256x50xf32>, vector<8x50xf32> -> vector<8x50xf32>
    %c0_15 = arith.constant 0 : index
    %c0_16 = arith.constant 0 : index
    %17 = vector.load %arg7[%c0_15, %c0_16] : memref<1x50xf32, #tpu.memory_space<vmem>>, vector<1x50xf32>
    %18 = vector.broadcast %17 : vector<1x50xf32> to vector<8x50xf32>
    %19 = arith.addf %16, %18 : vector<8x50xf32>
    %20 = math.tanh %19 : vector<8x50xf32>
    %c0_17 = arith.constant 0 : index
    %c0_18 = arith.constant 0 : index
    %21 = vector.load %arg8[%c0_17, %c0_18] : memref<8x50xf32, #tpu.memory_space<vmem>>, vector<8x50xf32>
    tpu.vector_store %arg8[%c0_17, %c0_18], %20 {strides = array<i32>} : memref<8x50xf32, #tpu.memory_space<vmem>>, vector<8x50xf32>,
    return
  }
  func.func @transform_0(%arg0: i32) -> (i32, i32) {
    %c0_i32 = arith.constant 0 : i32
    %c0_i32_0 = arith.constant 0 : i32
    return %arg0, %c0_i32 : i32, i32
  }
  func.func @transform_1(%arg0: i32) -> (i32, i32) {
    %c0_i32 = arith.constant 0 : i32
    %c0_i32_0 = arith.constant 0 : i32
    %c0_i32_1 = arith.constant 0 : i32
    return %c0_i32, %c0_i32_0 : i32, i32
  }
  func.func @transform_2(%arg0: i32) -> (i32, i32) {
    %c0_i32 = arith.constant 0 : i32
    %c0_i32_0 = arith.constant 0 : i32
    %c0_i32_1 = arith.constant 0 : i32
    return %c0_i32, %c0_i32_0 : i32, i32
  }
  func.func @transform_3(%arg0: i32) -> (i32, i32) {
    %c0_i32 = arith.constant 0 : i32
    %c0_i32_0 = arith.constant 0 : i32
    %c0_i32_1 = arith.constant 0 : i32
    return %c0_i32, %c0_i32_0 : i32, i32
  }
  func.func @transform_4(%arg0: i32) -> (i32, i32) {
    %c0_i32 = arith.constant 0 : i32
    %c0_i32_0 = arith.constant 0 : i32
    %c0_i32_1 = arith.constant 0 : i32
    return %c0_i32, %c0_i32_0 : i32, i32
  }
  func.func @transform_5(%arg0: i32) -> (i32, i32) {
    %c0_i32 = arith.constant 0 : i32
    %c0_i32_0 = arith.constant 0 : i32
    %c0_i32_1 = arith.constant 0 : i32
    return %c0_i32, %c0_i32_0 : i32, i32
  }
  func.func @transform_6(%arg0: i32) -> (i32, i32) {
    %c0_i32 = arith.constant 0 : i32
    %c0_i32_0 = arith.constant 0 : i32
    %c0_i32_1 = arith.constant 0 : i32
    return %c0_i32, %c0_i32_0 : i32, i32
  }
  func.func @transform_7(%arg0: i32) -> (i32, i32) {
    %c0_i32 = arith.constant 0 : i32
    %c0_i32_0 = arith.constant 0 : i32
    return %arg0, %c0_i32 : i32, i32
  }
}

</mosaic_0001>

<llo_original>
// kernel: tpu_custom_call.1
$region0: #{tpu_custom_call.1}
  #allocation0 [shape = 'u32[]', space=smem, size = 0x4, offset = 0x4, fixed_abs, tag = 'smem constant byte address 0x4 - core index']
  #allocation1 [shape = 'u32[144,128]{1,0:T(1,128)}', space=vmem, size = 0x12000, scoped, tag = 'internal scratch']
  %s0 = inlined_call_operand.vmem [shape: f32[8,10], index: 0, kind: input, shape index: {}]
  %s1 = inlined_call_operand.vmem [shape: f32[10,128], index: 1, kind: input, shape index: {}]
  %s2 = inlined_call_operand.vmem [shape: f32[1,128], index: 2, kind: input, shape index: {}]
  %s3 = inlined_call_operand.vmem [shape: f32[128,256], index: 3, kind: input, shape index: {}]
  %s4 = inlined_call_operand.vmem [shape: f32[1,256], index: 4, kind: input, shape index: {}]
  %s5 = inlined_call_operand.vmem [shape: f32[256,50], index: 5, kind: input, shape index: {}]
  %s6 = inlined_call_operand.vmem [shape: f32[1,50], index: 6, kind: input, shape index: {}]
  %s7 = inlined_call_operand.hbm [shape: f32[8,50], index: 7, kind: output, shape index: {}]
  %s8 = sld [smem:[#allocation0]]
  $region38: #{tpu_custom_call.1} parent=0
    _
  %s10 = ssub.s32 1, %s8
  %s11 = scalar_select 0, %s10, %s8
  $region1: #{tpu_custom_call.1} parent=0
    #allocation2 [shape = 'u8[4096]{0}', space=vmem, size = 0x1000, scoped, tag = 'output window, operand 0, single buffered']
    #allocation3 [shape = 's32[1]{0}', space=sflag, size = 0x4, scoped, tag = 'scoped memory for tpu_custom_call.1']
    %12 = vsyncpa [#allocation3], 0
    // Predicated region
    $region2: #{tpu_custom_call.1} parent=1 // pred_check
      _
    $region3: #{tpu_custom_call.1} parent=1 // pred_check_branch
      %14 = sbr.rel (0) target = $region5
    $region4: #{tpu_custom_call.1} parent=1 // pred_region
      _
    $region5: #{tpu_custom_call.1} parent=1 // pred_fallthru
      _
    // Predicated region
    $region6: #{tpu_custom_call.1} parent=1 // pred_check
      _
    $region7: #{tpu_custom_call.1} parent=1 // pred_check_branch
      %16 = sbr.rel (0) target = $region9
    $region8: #{tpu_custom_call.1} parent=1 // pred_region
      _
    $region9: #{tpu_custom_call.1} parent=1 // pred_fallthru
      _
    // Predicated region
    $region10: #{tpu_custom_call.1} parent=1 // pred_check
      _
    $region11: #{tpu_custom_call.1} parent=1 // pred_check_branch
      %18 = sbr.rel (0) target = $region13
    $region12: #{tpu_custom_call.1} parent=1 // pred_region
      _
    $region13: #{tpu_custom_call.1} parent=1 // pred_fallthru
      _
    // Predicated region
    $region14: #{tpu_custom_call.1} parent=1 // pred_check
      _
    $region15: #{tpu_custom_call.1} parent=1 // pred_check_branch
      %20 = sbr.rel (0) target = $region17
    $region16: #{tpu_custom_call.1} parent=1 // pred_region
      _
    $region17: #{tpu_custom_call.1} parent=1 // pred_fallthru
      _
    // Predicated region
    $region18: #{tpu_custom_call.1} parent=1 // pred_check
      _
    $region19: #{tpu_custom_call.1} parent=1 // pred_check_branch
      %22 = sbr.rel (0) target = $region21
    $region20: #{tpu_custom_call.1} parent=1 // pred_region
      _
    $region21: #{tpu_custom_call.1} parent=1 // pred_fallthru
      _
    // Predicated region
    $region22: #{tpu_custom_call.1} parent=1 // pred_check
      _
    $region23: #{tpu_custom_call.1} parent=1 // pred_check_branch
      %24 = sbr.rel (0) target = $region25
    $region24: #{tpu_custom_call.1} parent=1 // pred_region
      _
    $region25: #{tpu_custom_call.1} parent=1 // pred_fallthru
      _
    // Predicated region
    $region26: #{tpu_custom_call.1} parent=1 // pred_check
      _
    $region27: #{tpu_custom_call.1} parent=1 // pred_check_branch
      %26 = sbr.rel (0) target = $region29
    $region28: #{tpu_custom_call.1} parent=1 // pred_region
      _
    $region29: #{tpu_custom_call.1} parent=1 // pred_fallthru
      _
    %v27 = vld [vmem:[%s0] sm:$0xff]
    %v28 = vld [vmem:[%s1] sm:$0xff]
    %v29 = vld [vmem:[%s1 + $0x8] sm:$0x3]
    %v30 = vld [vmem:[%s2] sm:$0x1]
    %v32 = vlaneseq
    %v33 = vshrl.u32 %v32, 7
    %v34 = vsub.s32 0, %v33
    %v35 = vrot.slane %v30, %v34
    %vm37 = vcmask 80896
    %v39 = vsel %vm37, %v27, 0
    %vm41 = vcmask 1041408
    %v43 = vsel %vm41, %v29, 0
    %45 = vmatprep.subr.mxu0 0.0
    %46 = vmatpush1.msra.mxu0 %v28
    %47 = vmatprep.subr.mxu0 0.0
    %48 = vmatpush1.msra.mxu0 %v43
    %49 = vmatprep.subr.mxu0 0.0
    %50 = vmatpush1.msra.mxu0 0.0
    %51 = vmatprep.subr.mxu0 0.0
    %52 = vmatpush1.msra.mxu0 0.0
    %53 = vmatprep.subr.mxu0 0.0
    %54 = vmatpush1.msra.mxu0 0.0
    %55 = vmatprep.subr.mxu0 0.0
    %56 = vmatpush1.msra.mxu0 0.0
    %57 = vmatprep.subr.mxu0 0.0
    %58 = vmatpush1.msra.mxu0 0.0
    %59 = vmatprep.subr.mxu0 0.0
    %60 = vmatpush1.msra.mxu0 0.0
    %61 = vmatprep.subr.mxu0 0.0
    %62 = vmatpush1.msra.mxu0 0.0
    %63 = vmatprep.subr.mxu0 0.0
    %64 = vmatpush1.msra.mxu0 0.0
    %65 = vmatprep.subr.mxu0 0.0
    %66 = vmatpush1.msra.mxu0 0.0
    %67 = vmatprep.subr.mxu0 0.0
    %68 = vmatpush1.msra.mxu0 0.0
    %69 = vmatprep.subr.mxu0 0.0
    %70 = vmatpush1.msra.mxu0 0.0
    %71 = vmatprep.subr.mxu0 0.0
    %72 = vmatpush1.msra.mxu0 0.0
    %73 = vmatprep.subr.mxu0 0.0
    %74 = vmatpush1.msra.mxu0 0.0
    %75 = vmatprep.subr.mxu0 0.0
    %76 = vmatpush1.msra.mxu0 0.0
    %77 = vmatprep.subr.mxu0 0.0
    %78 = vmatpush1.msra.mxu0 0.0
    %79 = vmatprep.subr.mxu0 0.0
    %80 = vmatpush1.msra.mxu0 0.0
    %81 = vmatprep.subr.mxu0 0.0
    %82 = vmatpush1.msra.mxu0 0.0
    %83 = vmatprep.subr.mxu0 0.0
    %84 = vmatpush1.msra.mxu0 0.0
    %85 = vmatprep.subr.mxu0 0.0
    %86 = vmatpush1.msra.mxu0 0.0
    %87 = vmatprep.subr.mxu0 0.0
    %88 = vmatpush1.msra.mxu0 0.0
    %89 = vmatprep.subr.mxu0 0.0
    %90 = vmatpush1.msra.mxu0 0.0
    %91 = vmatprep.subr.mxu0 0.0
    %92 = vmatpush1.msra.mxu0 0.0
    %93 = vmatprep.subr.mxu0 0.0
    %94 = vmatpush1.msra.mxu0 0.0
    %95 = vmatprep.subr.mxu0 0.0
    %96 = vmatpush1.msra.mxu0 0.0
    %97 = vmatprep.subr.mxu0 0.0
    %98 = vmatpush1.msra.mxu0 0.0
    %99 = vmatprep.subr.mxu0 0.0
    %100 = vmatpush1.msra.mxu0 0.0
    %101 = vmatprep.subr.mxu0 0.0
    %102 = vmatpush1.msra.mxu0 0.0
    %103 = vmatprep.subr.mxu0 0.0
    %104 = vmatpush1.msra.mxu0 0.0
    %105 = vmatprep.subr.mxu0 0.0
    %106 = vmatpush1.msra.mxu0 0.0
    %107 = vmatprep.subr.mxu0 0.0
    %108 = vmatpush1.msra.mxu0 0.0
    %109 = vmatprep.mubr.f32.mxu0 0.0
    %110 = vmatmul.mubr.f32.gmra.mrb[0].mxu0 %v39
    %v111 = vpop.f32.mrb[0].mxu0
    %v112 = vadd.f32 %v35, %v111
    %v113 = vpop.f32.mrb[0].mxu0
    %114 = vdwg.mxu0
    %v115 = vmax.f32 %v112, 0.0
    %v116 = vld [vmem:[%s3] sm:$0xff]
    %v117 = vld [vmem:[%s3 + $0x8] sm:$0xff]
    %v118 = vld [vmem:[%s3 + $0x10] sm:$0xff]
    %v119 = vld [vmem:[%s3 + $0x18] sm:$0xff]
    %v120 = vld [vmem:[%s3 + $0x20] sm:$0xff]
    %v121 = vld [vmem:[%s3 + $0x28] sm:$0xff]
    %v122 = vld [vmem:[%s3 + $0x30] sm:$0xff]
    %v123 = vld [vmem:[%s3 + $0x38] sm:$0xff]
    %v124 = vld [vmem:[%s3 + $0x40] sm:$0xff]
    %v125 = vld [vmem:[%s3 + $0x48] sm:$0xff]
    %v126 = vld [vmem:[%s3 + $0x50] sm:$0xff]
    %v127 = vld [vmem:[%s3 + $0x58] sm:$0xff]
    %v128 = vld [vmem:[%s3 + $0x60] sm:$0xff]
    %v129 = vld [vmem:[%s3 + $0x68] sm:$0xff]
    %v130 = vld [vmem:[%s3 + $0x70] sm:$0xff]
    %v131 = vld [vmem:[%s3 + $0x78] sm:$0xff]
    %v132 = vld [vmem:[%s3 + $0x80] sm:$0xff]
    %v133 = vld [vmem:[%s3 + $0x88] sm:$0xff]
    %v134 = vld [vmem:[%s3 + $0x90] sm:$0xff]
    %v135 = vld [vmem:[%s3 + $0x98] sm:$0xff]
    %v136 = vld [vmem:[%s3 + $0xa0] sm:$0xff]
    %v137 = vld [vmem:[%s3 + $0xa8] sm:$0xff]
    %v138 = vld [vmem:[%s3 + $0xb0] sm:$0xff]
    %v139 = vld [vmem:[%s3 + $0xb8] sm:$0xff]
    %v140 = vld [vmem:[%s3 + $0xc0] sm:$0xff]
    %v141 = vld [vmem:[%s3 + $0xc8] sm:$0xff]
    %v142 = vld [vmem:[%s3 + $0xd0] sm:$0xff]
    %v143 = vld [vmem:[%s3 + $0xd8] sm:$0xff]
    %v144 = vld [vmem:[%s3 + $0xe0] sm:$0xff]
    %v145 = vld [vmem:[%s3 + $0xe8] sm:$0xff]
    %v146 = vld [vmem:[%s3 + $0xf0] sm:$0xff]
    %v147 = vld [vmem:[%s3 + $0xf8] sm:$0xff]
    %v148 = vld [vmem:[%s4] sm:$0x3]
    %v150 = vlaneseq
    %v151 = vshrl.u32 %v150, 7
    %v152 = vsub.s32 0, %v151
    %v153 = vrot.slane %v148, %v152
    %v154 = vlaneseq
    %v155 = vshrl.u32 %v154, 7
    %v156 = vsub.s32 1, %v155
    %v157 = vrot.slane %v148, %v156
    %160 = vmatprep.subr.mxu0 %v117
    %161 = vmatpush1.msra.mxu0 %v116
    %162 = vmatprep.subr.mxu0 %v119
    %163 = vmatpush1.msra.mxu0 %v118
    %164 = vmatprep.subr.mxu0 %v121
    %165 = vmatpush1.msra.mxu0 %v120
    %166 = vmatprep.subr.mxu0 %v123
    %167 = vmatpush1.msra.mxu0 %v122
    %168 = vmatprep.subr.mxu0 %v125
    %169 = vmatpush1.msra.mxu0 %v124
    %170 = vmatprep.subr.mxu0 %v127
    %171 = vmatpush1.msra.mxu0 %v126
    %172 = vmatprep.subr.mxu0 %v129
    %173 = vmatpush1.msra.mxu0 %v128
    %174 = vmatprep.subr.mxu0 %v131
    %175 = vmatpush1.msra.mxu0 %v130
    %176 = vmatprep.subr.mxu0 %v133
    %177 = vmatpush1.msra.mxu0 %v132
    %178 = vmatprep.subr.mxu0 %v135
    %179 = vmatpush1.msra.mxu0 %v134
    %180 = vmatprep.subr.mxu0 %v137
    %181 = vmatpush1.msra.mxu0 %v136
    %182 = vmatprep.subr.mxu0 %v139
    %183 = vmatpush1.msra.mxu0 %v138
    %184 = vmatprep.subr.mxu0 %v141
    %185 = vmatpush1.msra.mxu0 %v140
    %186 = vmatprep.subr.mxu0 %v143
    %187 = vmatpush1.msra.mxu0 %v142
    %188 = vmatprep.subr.mxu0 %v145
    %189 = vmatpush1.msra.mxu0 %v144
    %190 = vmatprep.subr.mxu0 %v147
    %191 = vmatpush1.msra.mxu0 %v146
    %192 = vmatprep.subr.mxu0 0.0
    %193 = vmatpush1.msra.mxu0 0.0
    %194 = vmatprep.subr.mxu0 0.0
    %195 = vmatpush1.msra.mxu0 0.0
    %196 = vmatprep.subr.mxu0 0.0
    %197 = vmatpush1.msra.mxu0 0.0
    %198 = vmatprep.subr.mxu0 0.0
    %199 = vmatpush1.msra.mxu0 0.0
    %200 = vmatprep.subr.mxu0 0.0
    %201 = vmatpush1.msra.mxu0 0.0
    %202 = vmatprep.subr.mxu0 0.0
    %203 = vmatpush1.msra.mxu0 0.0
    %204 = vmatprep.subr.mxu0 0.0
    %205 = vmatpush1.msra.mxu0 0.0
    %206 = vmatprep.subr.mxu0 0.0
    %207 = vmatpush1.msra.mxu0 0.0
    %208 = vmatprep.subr.mxu0 0.0
    %209 = vmatpush1.msra.mxu0 0.0
    %210 = vmatprep.subr.mxu0 0.0
    %211 = vmatpush1.msra.mxu0 0.0
    %212 = vmatprep.subr.mxu0 0.0
    %213 = vmatpush1.msra.mxu0 0.0
    %214 = vmatprep.subr.mxu0 0.0
    %215 = vmatpush1.msra.mxu0 0.0
    %216 = vmatprep.subr.mxu0 0.0
    %217 = vmatpush1.msra.mxu0 0.0
    %218 = vmatprep.subr.mxu0 0.0
    %219 = vmatpush1.msra.mxu0 0.0
    %220 = vmatprep.subr.mxu0 0.0
    %221 = vmatpush1.msra.mxu0 0.0
    %222 = vmatprep.subr.mxu0 0.0
    %223 = vmatpush1.msra.mxu0 0.0
    %224 = vmatprep.mubr.f32.mxu0 0.0
    %225 = vmatmul.mubr.f32.gmra.mrb[0].mxu0 %v115
    %v226 = vpop.f32.mrb[0].mxu0
    %v227 = vadd.f32 %v153, %v226
    %v228 = vpop.f32.mrb[0].mxu0
    %v229 = vadd.f32 %v157, %v228
    %230 = vdwg.mxu0
    %v231 = vmax.f32 %v227, 0.0
    %v232 = vmax.f32 %v229, 0.0
    %v233 = vld [vmem:[%s5] sm:$0xff]
    %v234 = vld [vmem:[%s5 + $0x8] sm:$0xff]
    %v235 = vld [vmem:[%s5 + $0x10] sm:$0xff]
    %v236 = vld [vmem:[%s5 + $0x18] sm:$0xff]
    %v237 = vld [vmem:[%s5 + $0x20] sm:$0xff]
    %v238 = vld [vmem:[%s5 + $0x28] sm:$0xff]
    %v239 = vld [vmem:[%s5 + $0x30] sm:$0xff]
    %v240 = vld [vmem:[%s5 + $0x38] sm:$0xff]
    %v241 = vld [vmem:[%s5 + $0x40] sm:$0xff]
    %v242 = vld [vmem:[%s5 + $0x48] sm:$0xff]
    %v243 = vld [vmem:[%s5 + $0x50] sm:$0xff]
    %v244 = vld [vmem:[%s5 + $0x58] sm:$0xff]
    %v245 = vld [vmem:[%s5 + $0x60] sm:$0xff]
    %v246 = vld [vmem:[%s5 + $0x68] sm:$0xff]
    %v247 = vld [vmem:[%s5 + $0x70] sm:$0xff]
    %v248 = vld [vmem:[%s5 + $0x78] sm:$0xff]
    %v249 = vld [vmem:[%s5 + $0x80] sm:$0xff]
    %v250 = vld [vmem:[%s5 + $0x88] sm:$0xff]
    %v251 = vld [vmem:[%s5 + $0x90] sm:$0xff]
    %v252 = vld [vmem:[%s5 + $0x98] sm:$0xff]
    %v253 = vld [vmem:[%s5 + $0xa0] sm:$0xff]
    %v254 = vld [vmem:[%s5 + $0xa8] sm:$0xff]
    %v255 = vld [vmem:[%s5 + $0xb0] sm:$0xff]
    %v256 = vld [vmem:[%s5 + $0xb8] sm:$0xff]
    %v257 = vld [vmem:[%s5 + $0xc0] sm:$0xff]
    %v258 = vld [vmem:[%s5 + $0xc8] sm:$0xff]
    %v259 = vld [vmem:[%s5 + $0xd0] sm:$0xff]
    %v260 = vld [vmem:[%s5 + $0xd8] sm:$0xff]
    %v261 = vld [vmem:[%s5 + $0xe0] sm:$0xff]
    %v262 = vld [vmem:[%s5 + $0xe8] sm:$0xff]
    %v263 = vld [vmem:[%s5 + $0xf0] sm:$0xff]
    %v264 = vld [vmem:[%s5 + $0xf8] sm:$0xff]
    %v265 = vld [vmem:[%s6] sm:$0x1]
    %v267 = vlaneseq
    %v268 = vshrl.u32 %v267, 7
    %v269 = vsub.s32 0, %v268
    %v270 = vrot.slane %v265, %v269
    %272 = vmatprep.subr.mxu0 0.0
    %273 = vmatpush1.msra.mxu0 %v233
    %274 = vmatprep.subr.mxu0 0.0
    %275 = vmatpush1.msra.mxu0 %v234
    %276 = vmatprep.subr.mxu0 0.0
    %277 = vmatpush1.msra.mxu0 %v235
    %278 = vmatprep.subr.mxu0 0.0
    %279 = vmatpush1.msra.mxu0 %v236
    %280 = vmatprep.subr.mxu0 0.0
    %281 = vmatpush1.msra.mxu0 %v237
    %282 = vmatprep.subr.mxu0 0.0
    %283 = vmatpush1.msra.mxu0 %v238
    %284 = vmatprep.subr.mxu0 0.0
    %285 = vmatpush1.msra.mxu0 %v239
    %286 = vmatprep.subr.mxu0 0.0
    %287 = vmatpush1.msra.mxu0 %v240
    %288 = vmatprep.subr.mxu0 0.0
    %289 = vmatpush1.msra.mxu0 %v241
    %290 = vmatprep.subr.mxu0 0.0
    %291 = vmatpush1.msra.mxu0 %v242
    %292 = vmatprep.subr.mxu0 0.0
    %293 = vmatpush1.msra.mxu0 %v243
    %294 = vmatprep.subr.mxu0 0.0
    %295 = vmatpush1.msra.mxu0 %v244
    %296 = vmatprep.subr.mxu0 0.0
    %297 = vmatpush1.msra.mxu0 %v245
    %298 = vmatprep.subr.mxu0 0.0
    %299 = vmatpush1.msra.mxu0 %v246
    %300 = vmatprep.subr.mxu0 0.0
    %301 = vmatpush1.msra.mxu0 %v247
    %302 = vmatprep.subr.mxu0 0.0
    %303 = vmatpush1.msra.mxu0 %v248
    %304 = vmatprep.subr.mxu0 0.0
    %305 = vmatpush1.msra.mxu0 %v249
    %306 = vmatprep.subr.mxu0 0.0
    %307 = vmatpush1.msra.mxu0 %v250
    %308 = vmatprep.subr.mxu0 0.0
    %309 = vmatpush1.msra.mxu0 %v251
    %310 = vmatprep.subr.mxu0 0.0
    %311 = vmatpush1.msra.mxu0 %v252
    %312 = vmatprep.subr.mxu0 0.0
    %313 = vmatpush1.msra.mxu0 %v253
    %314 = vmatprep.subr.mxu0 0.0
    %315 = vmatpush1.msra.mxu0 %v254
    %316 = vmatprep.subr.mxu0 0.0
    %317 = vmatpush1.msra.mxu0 %v255
    %318 = vmatprep.subr.mxu0 0.0
    %319 = vmatpush1.msra.mxu0 %v256
    %320 = vmatprep.subr.mxu0 0.0
    %321 = vmatpush1.msra.mxu0 %v257
    %322 = vmatprep.subr.mxu0 0.0
    %323 = vmatpush1.msra.mxu0 %v258
    %324 = vmatprep.subr.mxu0 0.0
    %325 = vmatpush1.msra.mxu0 %v259
    %326 = vmatprep.subr.mxu0 0.0
    %327 = vmatpush1.msra.mxu0 %v260
    %328 = vmatprep.subr.mxu0 0.0
    %329 = vmatpush1.msra.mxu0 %v261
    %330 = vmatprep.subr.mxu0 0.0
    %331 = vmatpush1.msra.mxu0 %v262
    %332 = vmatprep.subr.mxu0 0.0
    %333 = vmatpush1.msra.mxu0 %v263
    %334 = vmatprep.subr.mxu0 0.0
    %335 = vmatpush1.msra.mxu0 %v264
    %336 = vmatprep.mubr.f32.mxu0 %v232
    %337 = vmatmul.mubr.f32.gmra.mrb[0].mxu0 %v231
    %v338 = vpop.f32.mrb[0].mxu0
    %v339 = vadd.f32 %v270, %v338
    %v340 = vpop.f32.mrb[0].mxu0
    %341 = vdwg.mxu0
    %v342 = vtanh.pop %v339
    %vm343 = vcmask 408576
    %344 = vst.msk [vmem:[#allocation2] sm:$0xff] %vm343, %v342
    // Predicated region
    $region30: #{tpu_custom_call.1} parent=1 // pred_check
      _
    $region31: #{tpu_custom_call.1} parent=1 // pred_check_branch
      %346 = sbr.rel (0) target = $region33
    $region32: #{tpu_custom_call.1} parent=1 // pred_region
      %s348 = ssub.s32 128, 128
      %349 = vsyncadd [#allocation3], %s348
      %s351 = sshll.u32 [#allocation2], 4
      %s352 = int_to_ptr.vmem [resolvable:$true] %s351
      %354 = dma.vmem_to_hbm [thread:$0]  %s352, 128, %s7, [#allocation3]
    $region33: #{tpu_custom_call.1} parent=1 // pred_fallthru
      _
    // Predicated region
    $region34: #{tpu_custom_call.1} parent=1 // pred_check
      _
    $region35: #{tpu_custom_call.1} parent=1 // pred_check_branch
      %356 = sbr.rel (0) target = $region37
    $region36: #{tpu_custom_call.1} parent=1 // pred_region
      %357 = dma.done [#allocation3], 128
    $region37: #{tpu_custom_call.1} parent=1 // pred_fallthru
      _
    %358 = vsyncpa [#allocation3], 1

</llo_original>
